<compile_context>
chip_gen: v7x
topology: tpu7x:2x2x1
jax: 0.10.0
libtpu: 0.0.40
codegen_flags: <defaults>
</compile_context>

<pallas_src>
import jax
import jax.numpy as jnp
from jax import lax
from jax.experimental import pallas as pl
from jax.experimental.pallas import tpu as pltpu

LANE = 128


def _make_kernel(TR, L, R, Jp, need_row_mask, fold):
    """Build the kernel closed over static tile geometry."""

    def kernel(x_ref, t_ref, out_ref, sacc, cacc):
        j = pl.program_id(2)

        @pl.when(j == 0)
        def _():
            sacc[...] = jnp.zeros_like(sacc)
            cacc[...] = jnp.zeros_like(cacc)

        x = x_ref[...]                              # (C, TR, L) logits (native dtype)
        t = t_ref[...]                              # (TR, L) int32 targets

        # pred_index mask; the row-bound check is only emitted when a block
        # can extend past the last pixel row (partial / duplicated blocks).
        valid = t > 0
        if need_row_mask:
            p = pl.program_id(1)
            row = (p * Jp + j) * TR + lax.broadcasted_iota(jnp.int32, (TR, L), 0)
            valid = valid & (row < R)

        # labels = (t - 1) % max(t) == t - 1 for every unmasked (t > 0) pixel.
        labels = t - 1                              # (TR, L)

        # Cross entropy per pixel: lse(x) - x[label].  C is a leading plane
        # axis, so the class reductions are elementwise VPU ops across planes.
        # max / label-pick stay in the input dtype; exp / log run in f32 (EUP).
        m = jnp.max(x, axis=0)                                    # (TR, L)
        e = jnp.exp((x - m[None]).astype(jnp.float32))            # (C, TR, L)
        lse = jnp.log(jnp.sum(e, axis=0)) + m.astype(jnp.float32)

        cls = lax.broadcasted_iota(jnp.int32, x.shape, 0)         # (C, TR, L)
        picked = jnp.sum(jnp.where(cls == labels[None], x, 0.0),
                         axis=0).astype(jnp.float32)
        loss = lse - picked                                       # (TR, L)

        # Masked partials (select, not multiply, so garbage never propagates).
        loss_p = jnp.where(valid, loss, 0.0)
        cnt_p = valid.astype(jnp.float32)
        if fold:
            # Layout-preserving fold of the (TR, L) partials down to a single
            # (8, L) tile group before the accumulator read-modify-write.
            loss_p = jnp.sum(loss_p.reshape(TR // 8, 8, L), axis=0)
            cnt_p = jnp.sum(cnt_p.reshape(TR // 8, 8, L), axis=0)
        sacc[...] = sacc[...] + loss_p
        cacc[...] = cacc[...] + cnt_p

        @pl.when(j == pl.num_programs(2) - 1)
        def _():
            s = jnp.sum(sacc[...])
            c = jnp.sum(cacc[...])
            lane = lax.broadcasted_iota(jnp.int32, (1, 2), 1)
            out_ref[...] = jnp.where(lane == 0, s, c)             # (1, 2)

    return kernel


def nonzero_weighted_cross_entropy(output, target, *, block_bytes=8 * 1024 * 1024):
    """output: (N, C, H, W) float logits; target: (N, H, W) int class ids."""
    N, C, H, W = output.shape
    HW = H * W

    # Zero-copy views only -- never pad the logits.
    if HW % LANE == 0:
        R, L = HW // LANE, LANE          # dense 128-lane pixel rows
    else:
        R, L = H, W                      # ragged fallback: lanes = W
    x = output.reshape(N, C, R, L)
    t = target.reshape(N, R, L).astype(jnp.int32)

    # Block sizing: ~block_bytes of (logits + int32 targets) per grid step,
    # accounting for lane padding of the VMEM tiles when L < a lane multiple.
    itemsize = jnp.dtype(output.dtype).itemsize
    Lp = ((L + LANE - 1) // LANE) * LANE
    per_row_vmem = Lp * (C * itemsize + 4)
    tr = block_bytes // per_row_vmem
    tr = max(8, (tr // 8) * 8)
    tr = min(tr, 8192)
    TR = R if R <= tr else tr            # full-dim block is always legal
    Jrb = pl.cdiv(R, TR)                 # number of row blocks per image

    # Pixel-chunk parallel axis: give both v7x TensorCores work when N == 1.
    P = 2 if (N == 1 and Jrb >= 2) else 1
    Jp = pl.cdiv(Jrb, P)

    fold = (TR % 8 == 0) and (TR >= 16)
    FR = 8 if fold else TR
    need_row_mask = (P * Jp * TR != R)

    def row_block(p, j):
        bi = p * Jp + j
        if P > 1:
            # Duplicate (fully row-masked) tail block instead of going OOB.
            bi = jnp.minimum(bi, Jrb - 1)
        return bi

    kernel = _make_kernel(TR, L, R, Jp, need_row_mask, fold)

    partial = pl.pallas_call(
        kernel,
        out_shape=jax.ShapeDtypeStruct((N, P, 1, 2), jnp.float32),
        grid_spec=pltpu.PrefetchScalarGridSpec(
            num_scalar_prefetch=0,
            grid=(N, P, Jp),
            in_specs=[
                pl.BlockSpec((None, C, TR, L),
                             lambda n, p, j: (n, 0, row_block(p, j), 0)),
                pl.BlockSpec((None, TR, L),
                             lambda n, p, j: (n, row_block(p, j), 0)),
            ],
            out_specs=pl.BlockSpec((None, None, 1, 2),
                                   lambda n, p, j: (n, p, 0, 0)),
            scratch_shapes=[
                pltpu.VMEM((FR, L), jnp.float32),   # folded loss partials
                pltpu.VMEM((FR, L), jnp.float32),   # folded count partials
            ]),
        compiler_params=pltpu.CompilerParams(
            dimension_semantics=("parallel", "parallel", "arbitrary"),
            vmem_limit_bytes=40 * 1024 * 1024),
    )(x, t)

    s = jnp.sum(partial[..., 0])
    c = jnp.sum(partial[..., 1])
    # torch: loss[pred_index > 0].mean() if torch.sum(pred_index > 0) else 0.0
    return jnp.where(c > 0, s / jnp.maximum(c, 1.0), jnp.float32(0.0))


def _reference(output, target):
    """Plain-JAX reference mirroring the PyTorch forward."""
    tmax = jnp.max(target)
    labels = jnp.mod(target.astype(jnp.int32) - 1, tmax)
    logp = jax.nn.log_softmax(output.astype(jnp.float32), axis=1)
    ll = jnp.take_along_axis(logp, labels[:, None, :, :], axis=1)[:, 0]
    loss_px = -ll
    mask = target > 0
    cnt = jnp.sum(mask)
    s = jnp.sum(jnp.where(mask, loss_px, 0.0))
    return jnp.where(cnt > 0, s / jnp.maximum(cnt, 1), 0.0)


def _run_case(key, n, c, h, w, **kw):
    k1, k2 = jax.random.split(key)
    output = jax.random.normal(k1, (n, c, h, w), dtype=jnp.float32)
    # targets in 0..C (0 = ignore/background, classes 1..C); max(target) <= C
    target = jax.random.randint(k2, (n, h, w), 0, c + 1, dtype=jnp.int32)

    loss = nonzero_weighted_cross_entropy(output, target, **kw)
    loss = jax.block_until_ready(loss)
    ref = _reference(output, target)
    assert jnp.allclose(loss, ref, atol=1e-4, rtol=1e-4), (loss, ref, (n, c, h, w))


if __name__ == "__main__":
    keys = jax.random.split(jax.random.PRNGKey(0), 4)
    # Main case: (N, C, H, W) = (2, 4, 16, 16), aligned H*W, one block/image.
    _run_case(keys[0], 2, 4, 16, 16)
    # Ragged H*W (no-pad path), single block.
    _run_case(keys[1], 1, 3, 10, 12)
    # Aligned, tiny block_bytes to exercise multi-block streaming, the (8, L)
    # fold, the partial-block row mask and the N==1 pixel-chunk parallel axis.
    _run_case(keys[2], 1, 4, 64, 64, block_bytes=64 * 1024)
    # Ragged, multi-block, odd block count: exercises the clamped duplicate
    # tail block plus accumulation across several grid steps per chunk.
    _run_case(keys[3], 1, 3, 40, 24, block_bytes=8 * 1024)
    print("KERNEL_OK")
</pallas_src>

<mosaic_0001>
module attributes {stable_mosaic.version = 11 : i64} {
  func.func @kernel(%arg0: i32, %arg1: i32, %arg2: i32, %arg3: memref<1x4x2x128xf32, #tpu.memory_space<vmem>>, %arg4: memref<1x2x128xi32, #tpu.memory_space<vmem>>, %arg5: memref<1x1x1x2xf32, #tpu.memory_space<vmem>>, %arg6: memref<2x128xf32, #tpu.memory_space<vmem>>, %arg7: memref<2x128xf32, #tpu.memory_space<vmem>>) attributes {dimension_semantics = [#tpu.dimension_semantics<parallel>, #tpu.dimension_semantics<parallel>, #tpu.dimension_semantics<arbitrary>], iteration_bounds = array<i64: 2, 1, 1>, scalar_prefetch = 0 : i64, scratch_operands = 2 : i64, tpu.core_type = #tpu.core_type<tc>, window_params = [{transform_indices = @transform_0, window_bounds = array<i64: 1, 4, 2, 128>}, {transform_indices = @transform_1, window_bounds = array<i64: 1, 2, 128>}, {transform_indices = @transform_2, window_bounds = array<i64: 1, 1, 1, 2>}]} {
    %c0_i32 = arith.constant 0 : i32
    %0 = arith.cmpi eq, %arg2, %c0_i32 : i32
    %1 = arith.extui %0 : i1 to i32
    %c0_i32_0 = arith.constant 0 : i32
    %2 = arith.cmpi ne, %1, %c0_i32_0 : i32
    scf.if %2 {
      %cst_22 = arith.constant 0.000000e+00 : f32
      %40 = vector.broadcast %cst_22 : f32 to vector<2x128xf32>
      %c0_23 = arith.constant 0 : index
      %c0_24 = arith.constant 0 : index
      %41 = vector.load %arg6[%c0_23, %c0_24] : memref<2x128xf32, #tpu.memory_space<vmem>>, vector<2x128xf32>
      tpu.vector_store %arg6[%c0_23, %c0_24], %40 {strides = array<i32>} : memref<2x128xf32, #tpu.memory_space<vmem>>, vector<2x128xf32>,
      %cst_25 = arith.constant 0.000000e+00 : f32
      %42 = vector.broadcast %cst_25 : f32 to vector<2x128xf32>
      %c0_26 = arith.constant 0 : index
      %c0_27 = arith.constant 0 : index
      %43 = vector.load %arg7[%c0_26, %c0_27] : memref<2x128xf32, #tpu.memory_space<vmem>>, vector<2x128xf32>
      tpu.vector_store %arg7[%c0_26, %c0_27], %42 {strides = array<i32>} : memref<2x128xf32, #tpu.memory_space<vmem>>, vector<2x128xf32>,
    } else {
    }
    %c0 = arith.constant 0 : index
    %c0_1 = arith.constant 0 : index
    %c0_2 = arith.constant 0 : index
    %c0_3 = arith.constant 0 : index
    %3 = vector.load %arg3[%c0, %c0_1, %c0_2, %c0_3] : memref<1x4x2x128xf32, #tpu.memory_space<vmem>>, vector<1x4x2x128xf32>
    %4 = vector.shape_cast %3 : vector<1x4x2x128xf32> to vector<4x2x128xf32>
    %c0_4 = arith.constant 0 : index
    %c0_5 = arith.constant 0 : index
    %c0_6 = arith.constant 0 : index
    %5 = vector.load %arg4[%c0_4, %c0_5, %c0_6] : memref<1x2x128xi32, #tpu.memory_space<vmem>>, vector<1x2x128xi32>
    %6 = vector.shape_cast %5 : vector<1x2x128xi32> to vector<2x128xi32>
    %c0_i32_7 = arith.constant 0 : i32
    %7 = vector.broadcast %c0_i32_7 : i32 to vector<2x128xi32>
    %8 = arith.cmpi sgt, %6, %7 : vector<2x128xi32>
    %c1_i32 = arith.constant 1 : i32
    %9 = vector.broadcast %c1_i32 : i32 to vector<2x128xi32>
    %10 = arith.subi %6, %9 : vector<2x128xi32>
    %cst = arith.constant dense<0xFF800000> : vector<2x128xf32>
    %11 = vector.multi_reduction <maximumf>, %4, %cst [0] : vector<4x2x128xf32> to vector<2x128xf32>
    %12 = vector.shape_cast %11 : vector<2x128xf32> to vector<1x2x128xf32>
    %13 = vector.broadcast %12 : vector<1x2x128xf32> to vector<4x2x128xf32>
    %14 = arith.subf %4, %13 : vector<4x2x128xf32>
    %15 = math.exp %14 : vector<4x2x128xf32>
    %cst_8 = arith.constant dense<0.000000e+00> : vector<2x128xf32>
    %16 = vector.multi_reduction <add>, %15, %cst_8 [0] : vector<4x2x128xf32> to vector<2x128xf32>
    %17 = math.log %16 : vector<2x128xf32>
    %18 = arith.addf %17, %11 : vector<2x128xf32>
    %19 = tpu.iota {dimensions = array<i32: 0>} : vector<4x2x128xi32>
    %20 = vector.shape_cast %10 : vector<2x128xi32> to vector<1x2x128xi32>
    %21 = vector.broadcast %20 : vector<1x2x128xi32> to vector<4x2x128xi32>
    %22 = arith.cmpi eq, %19, %21 : vector<4x2x128xi32>
    %cst_9 = arith.constant 0.000000e+00 : f32
    %23 = vector.broadcast %cst_9 : f32 to vector<4x2x128xf32>
    %24 = arith.select %22, %4, %23 : vector<4x2x128xi1>, vector<4x2x128xf32>
    %cst_10 = arith.constant dense<0.000000e+00> : vector<2x128xf32>
    %25 = vector.multi_reduction <add>, %24, %cst_10 [0] : vector<4x2x128xf32> to vector<2x128xf32>
    %26 = arith.subf %18, %25 : vector<2x128xf32>
    %cst_11 = arith.constant 0.000000e+00 : f32
    %27 = vector.broadcast %cst_11 : f32 to vector<2x128xf32>
    %28 = arith.select %8, %26, %27 : vector<2x128xi1>, vector<2x128xf32>
    %29 = arith.extui %8 : vector<2x128xi1> to vector<2x128xi32>
    %30 = arith.sitofp %29 : vector<2x128xi32> to vector<2x128xf32>
    %c0_12 = arith.constant 0 : index
    %c0_13 = arith.constant 0 : index
    %31 = vector.load %arg6[%c0_12, %c0_13] : memref<2x128xf32, #tpu.memory_space<vmem>>, vector<2x128xf32>
    %32 = arith.addf %31, %28 : vector<2x128xf32>
    %c0_14 = arith.constant 0 : index
    %c0_15 = arith.constant 0 : index
    %33 = vector.load %arg6[%c0_14, %c0_15] : memref<2x128xf32, #tpu.memory_space<vmem>>, vector<2x128xf32>
    tpu.vector_store %arg6[%c0_14, %c0_15], %32 {strides = array<i32>} : memref<2x128xf32, #tpu.memory_space<vmem>>, vector<2x128xf32>,
    %c0_16 = arith.constant 0 : index
    %c0_17 = arith.constant 0 : index
    %34 = vector.load %arg7[%c0_16, %c0_17] : memref<2x128xf32, #tpu.memory_space<vmem>>, vector<2x128xf32>
    %35 = arith.addf %34, %30 : vector<2x128xf32>
    %c0_18 = arith.constant 0 : index
    %c0_19 = arith.constant 0 : index
    %36 = vector.load %arg7[%c0_18, %c0_19] : memref<2x128xf32, #tpu.memory_space<vmem>>, vector<2x128xf32>
    tpu.vector_store %arg7[%c0_18, %c0_19], %35 {strides = array<i32>} : memref<2x128xf32, #tpu.memory_space<vmem>>, vector<2x128xf32>,
    %c0_i32_20 = arith.constant 0 : i32
    %37 = arith.cmpi eq, %arg2, %c0_i32_20 : i32
    %38 = arith.extui %37 : i1 to i32
    %c0_i32_21 = arith.constant 0 : i32
    %39 = arith.cmpi ne, %38, %c0_i32_21 : i32
    scf.if %39 {
      %c0_22 = arith.constant 0 : index
      %c0_23 = arith.constant 0 : index
      %40 = vector.load %arg6[%c0_22, %c0_23] : memref<2x128xf32, #tpu.memory_space<vmem>>, vector<2x128xf32>
      %41 = vector.shape_cast %40 : vector<2x128xf32> to vector<1x2x128xf32>
      %cst_24 = arith.constant dense<0.000000e+00> : vector<1xf32>
      %42 = vector.multi_reduction <add>, %41, %cst_24 [1, 2] : vector<1x2x128xf32> to vector<1xf32>
      %43 = vector.shape_cast %42 : vector<1xf32> to vector<1x1x1xf32>
      %44 = vector.extract %43[0, 0, 0] : f32 from vector<1x1x1xf32>
      %c0_25 = arith.constant 0 : index
      %c0_26 = arith.constant 0 : index
      %45 = vector.load %arg7[%c0_25, %c0_26] : memref<2x128xf32, #tpu.memory_space<vmem>>, vector<2x128xf32>
      %46 = vector.shape_cast %45 : vector<2x128xf32> to vector<1x2x128xf32>
      %cst_27 = arith.constant dense<0.000000e+00> : vector<1xf32>
      %47 = vector.multi_reduction <add>, %46, %cst_27 [1, 2] : vector<1x2x128xf32> to vector<1xf32>
      %48 = vector.shape_cast %47 : vector<1xf32> to vector<1x1x1xf32>
      %49 = vector.extract %48[0, 0, 0] : f32 from vector<1x1x1xf32>
      %50 = tpu.iota {dimensions = array<i32: 1>} : vector<1x2xi32>
      %c0_i32_28 = arith.constant 0 : i32
      %51 = vector.broadcast %c0_i32_28 : i32 to vector<1x2xi32>
      %52 = arith.cmpi eq, %50, %51 : vector<1x2xi32>
      %53 = vector.broadcast %44 : f32 to vector<1x2xf32>
      %54 = vector.broadcast %49 : f32 to vector<1x2xf32>
      %55 = arith.select %52, %53, %54 : vector<1x2xi1>, vector<1x2xf32>
      %c0_29 = arith.constant 0 : index
      %c0_30 = arith.constant 0 : index
      %c0_31 = arith.constant 0 : index
      %c0_32 = arith.constant 0 : index
      %56 = vector.load %arg5[%c0_29, %c0_30, %c0_31, %c0_32] : memref<1x1x1x2xf32, #tpu.memory_space<vmem>>, vector<1x1x1x2xf32>
      %57 = vector.shape_cast %56 : vector<1x1x1x2xf32> to vector<1x2xf32>
      %58 = vector.shape_cast %55 : vector<1x2xf32> to vector<1x1x1x2xf32>
      tpu.vector_store %arg5[%c0_29, %c0_30, %c0_31, %c0_32], %58 {strides = array<i32>} : memref<1x1x1x2xf32, #tpu.memory_space<vmem>>, vector<1x1x1x2xf32>,
    } else {
    }
    return
  }
  func.func @transform_0(%arg0: i32, %arg1: i32, %arg2: i32) -> (i32, i32, i32, i32) {
    %c1_i32 = arith.constant 1 : i32
    %0 = arith.muli %arg1, %c1_i32 : i32
    %1 = arith.addi %0, %arg2 : i32
    %c0_i32 = arith.constant 0 : i32
    %c0_i32_0 = arith.constant 0 : i32
    %c0_i32_1 = arith.constant 0 : i32
    return %arg0, %c0_i32, %1, %c0_i32_0 : i32, i32, i32, i32
  }
  func.func @transform_1(%arg0: i32, %arg1: i32, %arg2: i32) -> (i32, i32, i32) {
    %c1_i32 = arith.constant 1 : i32
    %0 = arith.muli %arg1, %c1_i32 : i32
    %1 = arith.addi %0, %arg2 : i32
    %c0_i32 = arith.constant 0 : i32
    %c0_i32_0 = arith.constant 0 : i32
    return %arg0, %1, %c0_i32 : i32, i32, i32
  }
  func.func @transform_2(%arg0: i32, %arg1: i32, %arg2: i32) -> (i32, i32, i32, i32) {
    %c0_i32 = arith.constant 0 : i32
    %c0_i32_0 = arith.constant 0 : i32
    %c0_i32_1 = arith.constant 0 : i32
    return %arg0, %arg1, %c0_i32, %c0_i32_0 : i32, i32, i32, i32
  }
}

</mosaic_0001>

<llo_original>
// kernel: tpu_custom_call.1
$region0: #{tpu_custom_call.1}
  #allocation0 [shape = 'u32[]', space=smem, size = 0x4, offset = 0x4, fixed_abs, tag = 'smem constant byte address 0x4 - core index']
  #allocation1 [shape = 'u32[144,128]{1,0:T(1,128)}', space=vmem, size = 0x12000, scoped, tag = 'internal scratch']
  #allocation2 [shape = 'f32[2,128]{1,0:T(2,128)}', space=vmem, size = 0x400, scoped, tag = 'scratch operand']
  #allocation3 [shape = 'f32[2,128]{1,0:T(2,128)}', space=vmem, size = 0x400, scoped, tag = 'scratch operand']
  %s0 = inlined_call_operand.hbm [shape: f32[2,4,2,128], index: 0, kind: input, shape index: {}]
  %s1 = inlined_call_operand.hbm [shape: s32[2,2,128], index: 1, kind: input, shape index: {}]
  %s2 = inlined_call_operand.hbm [shape: f32[2,1,1,2], index: 2, kind: output, shape index: {}]
  %s3 = sld [smem:[#allocation0]]
  $region57: #{tpu_custom_call.1} parent=0
    _
  %s5 = ssub.s32 1, %s3
  %s6 = scalar_select 0, %s5, %s3
  $region1: #{tpu_custom_call.1} parent=0
    #allocation4 [shape = 'u8[8192]{0}', space=vmem, size = 0x2000, scoped, tag = 'input window, operand 0']
    #allocation5 [shape = 's32[2]{0}', space=sflag, size = 0x8, scoped, tag = 'scoped memory for tpu_custom_call.1']
    #allocation6 [shape = 's32[2]{0}', space=sflag, size = 0x8, scoped, tag = 'scoped memory for tpu_custom_call.1']
    #allocation7 [shape = 'u8[2048]{0}', space=vmem, size = 0x800, scoped, tag = 'input window, operand 1']
    #allocation8 [shape = 's32[2]{0}', space=sflag, size = 0x8, scoped, tag = 'scoped memory for tpu_custom_call.1']
    #allocation9 [shape = 'u8[1024]{0}', space=vmem, size = 0x400, scoped, tag = 'output window, operand 0']
    %7 = vsyncpa [#allocation5], 0
    %s8 = scalar_lea.sflag [#allocation5], 1
    %9 = vsyncpa %s8, 0
    %10 = vsyncpa [#allocation8], 0
    %s11 = scalar_lea.sflag [#allocation8], 1
    %12 = vsyncpa %s11, 0
    %13 = vsyncpa [#allocation6], 0
    %s14 = scalar_lea.sflag [#allocation6], 1
    %15 = vsyncpa %s14, 0
    loop: start=0, step=1, limit=4
    $region2: #{tpu_custom_call.1} parent=1 // loop_pre_header
      _
    $region3: #{tpu_custom_call.1} parent=1 // loop_header
      %s17 = sphi 0, %s21
      %p18 = scmp.ge.s32.totalorder %s17, 4
      %s24 = sphi 0, %s43
      %s25 = sphi 0, %s39
      %s26 = sphi 0, %s35
      %s27 = sphi 0, %s24
      %s28 = sphi 0, %s25
      %s29 = sphi 0, %s26
      %s30 = sphi 0, %s27
      %s31 = sphi 0, %s28
      %s32 = sphi 0, %s29
      %s50 = sphi 0, %s52
      %s53 = sphi 0, %s50
      %s54 = sphi 0, %s53
      %s70 = sphi 0, %s54
      %s80 = sphi 0, %s82
      %s83 = sphi 0, %s80
      %s84 = sphi 0, %s83
      %s100 = sphi 0, %s84
      %s108 = sphi 0, %s110
      %s111 = sphi 0, %s108
      %s112 = sphi 0, %s111
      %s128 = sphi 0, %s112
    $region4: #{tpu_custom_call.1} parent=1 // loop_header_branch
      %20 = sbr.rel (%p18) target = $region8
    $region5: #{tpu_custom_call.1} parent=1 // loop_body
      %s22 = ssub.s32 %s17, 1
      %s23 = ssub.s32 %s17, 2
      %s33 = sadd.s32 1, %s26
      %p34 = scmp.ge.s32.totalorder %s33, 1
      %s35 = scalar_select %p34, 0, %s33
      %s36 = sadd.s32 1, %s25
      %s37 = scalar_select %p34, %s36, %s25
      %p38 = scmp.ge.s32.totalorder %s37, 1
      %s39 = scalar_select %p38, 0, %s37
      %s40 = sadd.s32 1, %s24
      %s41 = scalar_select %p38, %s40, %s24
      %p42 = scmp.ge.s32.totalorder %s41, 2
      %s43 = scalar_select %p42, 0, %s41
      %s44 = sadd.s32 %s25, %s26
      %s45 = sadd.s32 %s39, %s35
      %s46 = ssub.s32 %s24, %s43
      %s47 = ssub.s32 %s44, %s45
      %s48 = sor.u32 %s46, %s47
      %p49 = scmp.eq.s32.totalorder %s48, 0
      %s51 = sadd.s32 %s50, 1
      %s52 = scalar_select %p49, %s50, %s51
      %p55 = pneg %p49
      %p56 = scmp.eq.s32.totalorder %s17, 1
      %p57 = por %p55, %p56
      %p58 = scmp.ne.s32.totalorder %s50, %s53
      %p59 = scmp.eq.s32.totalorder %s17, 0
      %p60 = por %p58, %p59
      %p61 = scmp.ne.s32.totalorder %s50, %s53
      %p62 = scmp.eq.s32.totalorder %s22, 1
      %p63 = por %p61, %p62
      %p64 = scmp.ne.s32.totalorder %s53, %s54
      %p65 = scmp.eq.s32.totalorder %s22, 0
      %p66 = por %p64, %p65
      %p67 = scmp.ne.s32.totalorder %s53, %s54
      %p68 = scmp.eq.s32.totalorder %s23, 1
      %p69 = por %p67, %p68
      %p71 = scmp.ne.s32.totalorder %s54, %s70
      %p72 = scmp.eq.s32.totalorder %s23, 0
      %p73 = por %p71, %p72
      %s74 = sadd.s32 %s25, %s26
      %s75 = sadd.s32 %s39, %s35
      %s76 = ssub.s32 %s24, %s43
      %s77 = ssub.s32 %s74, %s75
      %s78 = sor.u32 %s76, %s77
      %p79 = scmp.eq.s32.totalorder %s78, 0
      %s81 = sadd.s32 %s80, 1
      %s82 = scalar_select %p79, %s80, %s81
      %p85 = pneg %p79
      %p86 = scmp.eq.s32.totalorder %s17, 1
      %p87 = por %p85, %p86
      %p88 = scmp.ne.s32.totalorder %s80, %s83
      %p89 = scmp.eq.s32.totalorder %s17, 0
      %p90 = por %p88, %p89
      %p91 = scmp.ne.s32.totalorder %s80, %s83
      %p92 = scmp.eq.s32.totalorder %s22, 1
      %p93 = por %p91, %p92
      %p94 = scmp.ne.s32.totalorder %s83, %s84
      %p95 = scmp.eq.s32.totalorder %s22, 0
      %p96 = por %p94, %p95
      %p97 = scmp.ne.s32.totalorder %s83, %s84
      %p98 = scmp.eq.s32.totalorder %s23, 1
      %p99 = por %p97, %p98
      %p101 = scmp.ne.s32.totalorder %s84, %s100
      %p102 = scmp.eq.s32.totalorder %s23, 0
      %p103 = por %p101, %p102
      %s104 = ssub.s32 %s24, %s43
      %s105 = ssub.s32 %s25, %s39
      %s106 = sor.u32 %s104, %s105
      %p107 = scmp.eq.s32.totalorder %s106, 0
      %s109 = sadd.s32 %s108, 1
      %s110 = scalar_select %p107, %s108, %s109
      %p113 = pneg %p107
      %p114 = scmp.eq.s32.totalorder %s17, 1
      %p115 = por %p113, %p114
      %p116 = scmp.ne.s32.totalorder %s108, %s111
      %p117 = scmp.eq.s32.totalorder %s17, 0
      %p118 = por %p116, %p117
      %p119 = scmp.ne.s32.totalorder %s108, %s111
      %p120 = scmp.eq.s32.totalorder %s22, 1
      %p121 = por %p119, %p120
      %p122 = scmp.ne.s32.totalorder %s111, %s112
      %p123 = scmp.eq.s32.totalorder %s22, 0
      %p124 = por %p122, %p123
      %p125 = scmp.ne.s32.totalorder %s111, %s112
      %p126 = scmp.eq.s32.totalorder %s23, 1
      %p127 = por %p125, %p126
      %p129 = scmp.ne.s32.totalorder %s112, %s128
      %p130 = scmp.eq.s32.totalorder %s23, 0
      %p131 = por %p129, %p130
      %p132 = scmp.le.s32.totalorder 1, %s17
      %p133 = scmp.lt.s32.totalorder %s17, 3
      %p134 = pnand %p132, %p133
      %p135 = pneg %p134
      // Predicated region
      $region9: #{tpu_custom_call.1} parent=5 // pred_check
        _
      $region10: #{tpu_custom_call.1} parent=5 // pred_check_branch
        %137 = sbr.rel (%p134) target = $region12
      $region11: #{tpu_custom_call.1} parent=5 // pred_region
        %s138 = ssub.s32 %s17, 1
      $region12: #{tpu_custom_call.1} parent=5 // pred_fallthru
        _
      %p139 = scmp.lt.s32.totalorder %s17, 2
      // Predicated region
      $region13: #{tpu_custom_call.1} parent=5 // pred_check
        %p140 = pneg %p139
      $region14: #{tpu_custom_call.1} parent=5 // pred_check_branch
        %142 = sbr.rel (%p140) target = $region16
      $region15: #{tpu_custom_call.1} parent=5 // pred_region
        // Predicated region
        $region17: #{tpu_custom_call.1} parent=15 // pred_check
          %p143 = pneg %p60
        $region18: #{tpu_custom_call.1} parent=15 // pred_check_branch
          %145 = sbr.rel (%p143) target = $region20
        $region19: #{tpu_custom_call.1} parent=15 // pred_region
          %s146 = sand.u32 %s50, 1
          %s147 = scalar_lea.sflag [#allocation5], %s146
          %s148 = sand.u32 %s50, 1
          %s149 = smul.addr %s148, 8
          %s150 = scalar_lea.vmem [#allocation4], %s149
          %s151 = sadd.s32 %s25, %s26
          %s153 = ssub.s32 128, 128
          %154 = vsyncadd %s147, %s153
          %s155 = smul.addr %s24, 4
          %s156 = sadd.s32 %s151, %s155
          %s157 = smul.addr %s156, 32
          %s158 = scalar_lea.hbm %s0, %s157
          %s159 = sshll.u32 %s150, 4
          %s160 = int_to_ptr.vmem [resolvable:$true] %s159
          %165 = dma.hbm_to_vmem [thread:$0]  %s158, 128, %s160, %s147, 32, 32, 2
        $region20: #{tpu_custom_call.1} parent=15 // pred_fallthru
          _
        // Predicated region
        $region21: #{tpu_custom_call.1} parent=15 // pred_check
          %p166 = pneg %p90
        $region22: #{tpu_custom_call.1} parent=15 // pred_check_branch
          %168 = sbr.rel (%p166) target = $region24
        $region23: #{tpu_custom_call.1} parent=15 // pred_region
          %s169 = sand.u32 %s80, 1
          %s170 = scalar_lea.sflag [#allocation8], %s169
          %s171 = sand.u32 %s80, 1
          %s172 = smul.addr %s171, 2
          %s173 = scalar_lea.vmem [#allocation7], %s172
          %s174 = sadd.s32 %s25, %s26
          %s176 = ssub.s32 32, 32
          %177 = vsyncadd %s170, %s176
          %s178 = sadd.s32 %s174, %s24
          %s179 = smul.addr %s178, 32
          %s180 = scalar_lea.hbm %s1, %s179
          %s182 = sshll.u32 %s173, 4
          %s183 = int_to_ptr.vmem [resolvable:$true] %s182
          %185 = dma.hbm_to_vmem [thread:$0]  %s180, 32, %s183, %s170
        $region24: #{tpu_custom_call.1} parent=15 // pred_fallthru
          _
      $region16: #{tpu_custom_call.1} parent=5 // pred_fallthru
        _
      %p186 = scmp.le.s32.totalorder 1, %s17
      %p187 = scmp.lt.s32.totalorder %s17, 3
      %p188 = pnand %p186, %p187
      %p189 = pneg %p188
      // Predicated region
      $region25: #{tpu_custom_call.1} parent=5 // pred_check
        _
      $region26: #{tpu_custom_call.1} parent=5 // pred_check_branch
        %191 = sbr.rel (%p188) target = $region28
      $region27: #{tpu_custom_call.1} parent=5 // pred_region
        %s192 = ssub.s32 %s17, 1
        %s193 = sand.u32 %s53, 1
        %s194 = scalar_lea.sflag [#allocation5], %s193
        %s195 = sand.u32 %s53, 1
        %s196 = smul.addr %s195, 8
        %s197 = scalar_lea.vmem [#allocation4], %s196
        // Predicated region
        $region29: #{tpu_custom_call.1} parent=27 // pred_check
          %p198 = pneg %p66
        $region30: #{tpu_custom_call.1} parent=27 // pred_check_branch
          %200 = sbr.rel (%p198) target = $region32
        $region31: #{tpu_custom_call.1} parent=27 // pred_region
          %201 = dma.done %s194, 128
        $region32: #{tpu_custom_call.1} parent=27 // pred_fallthru
          _
        %s202 = sand.u32 %s83, 1
        %s203 = scalar_lea.sflag [#allocation8], %s202
        %s204 = sand.u32 %s83, 1
        %s205 = smul.addr %s204, 2
        %s206 = scalar_lea.vmem [#allocation7], %s205
        // Predicated region
        $region33: #{tpu_custom_call.1} parent=27 // pred_check
          %p207 = pneg %p96
        $region34: #{tpu_custom_call.1} parent=27 // pred_check_branch
          %209 = sbr.rel (%p207) target = $region36
        $region35: #{tpu_custom_call.1} parent=27 // pred_region
          %210 = dma.done %s203, 32
        $region36: #{tpu_custom_call.1} parent=27 // pred_fallthru
          _
        %s211 = sand.u32 %s53, 1
        %s212 = scalar_lea.sflag [#allocation5], %s211
        %s213 = sand.u32 %s53, 1
        %s214 = smul.addr %s213, 8
        %s215 = scalar_lea.vmem [#allocation4], %s214
        %p216 = pneg %p66
        %p217 = pneg %p63
        %s218 = sand.u32 %s83, 1
        %s219 = scalar_lea.sflag [#allocation8], %s218
        %s220 = sand.u32 %s83, 1
        %s221 = smul.addr %s220, 2
        %s222 = scalar_lea.vmem [#allocation7], %s221
        %p223 = pneg %p96
        %p224 = pneg %p93
        %p225 = pneg %p124
        %p226 = pneg %p121
        %s227 = sand.u32 %s111, 1
        %s228 = scalar_lea.sflag [#allocation6], %s227
        %s229 = sand.u32 %s111, 1
        %s230 = scalar_lea.vmem [#allocation9], %s229
        %s231 = sadd.s32 %s28, %s29
        %s232 = sadd.s32 %s28, %s29
        %p233 = scmp.eq.s32.totalorder %s29, 0
        // Predicated region
        $region37: #{tpu_custom_call.1} parent=27 // pred_check
          %p234 = pneg %p233
        $region38: #{tpu_custom_call.1} parent=27 // pred_check_branch
          %236 = sbr.rel (%p234) target = $region40
        $region39: #{tpu_custom_call.1} parent=27 // pred_region
          %237 = vst [vmem:[#allocation2] sm:$0x3] 0.0
          %238 = vst [vmem:[#allocation3] sm:$0x3] 0.0
        $region40: #{tpu_custom_call.1} parent=27 // pred_fallthru
          _
        %v239 = vld [vmem:[%s197] sm:$0x3]
        %v240 = vld [vmem:[%s197 + $0x2] sm:$0x3]
        %v241 = vld [vmem:[%s197 + $0x4] sm:$0x3]
        %v242 = vld [vmem:[%s197 + $0x6] sm:$0x3]
        %v243 = vld [vmem:[%s206] sm:$0x3]
        %vm244 = vcmp.gt.s32.totalorder %v243, 0
        %v245 = vsub.s32 %v243, 1
        %vm246 = vcmask 1041408
        %v247 = vsel %vm246, %v239, -inf
        %v248 = vsel %vm246, %v240, -inf
        %v249 = vsel %vm246, %v241, -inf
        %v250 = vsel %vm246, %v242, -inf
        %v251 = vmax.f32 %v247, %v248
        %v252 = vmax.f32 %v249, %v250
        %v253 = vmax.f32 %v251, %v252
        %v254 = vsub.f32 %v239, %v253
        %v255 = vsub.f32 %v240, %v253
        %v256 = vsub.f32 %v241, %v253
        %v257 = vsub.f32 %v242, %v253
        %v258 = vmul.f32 %v254, 1.442695
        %v259 = vpow.pop %v258
        %v260 = vmul.f32 %v255, 1.442695
        %v261 = vpow.pop %v260
        %v262 = vmul.f32 %v256, 1.442695
        %v263 = vpow.pop %v262
        %v264 = vmul.f32 %v257, 1.442695
        %v265 = vpow.pop %v264
        %v266 = vsel %vm246, %v259, 0.0
        %v267 = vsel %vm246, %v261, 0.0
        %v268 = vadd.f32 %v266, %v267
        %v269 = vsel %vm246, %v263, 0.0
        %v270 = vadd.f32 %v268, %v269
        %v271 = vsel %vm246, %v265, 0.0
        %v272 = vadd.f32 %v270, %v271
        %v273 = vlog2.pop %v272
        %v274 = vmul.f32 %v273, 0.6931472
        %v275 = vadd.f32 %v274, %v253
        %vm276 = vcmp.eq.s32.totalorder %v245, 0
        %vm277 = vcmp.eq.s32.totalorder %v245, 1
        %vm278 = vcmp.eq.s32.totalorder %v245, 2
        %vm279 = vcmp.eq.s32.totalorder %v245, 3
        %v280 = vsel %vm276, %v239, 0.0
        %v281 = vsel %vm277, %v240, 0.0
        %v282 = vsel %vm278, %v241, 0.0
        %v283 = vsel %vm279, %v242, 0.0
        %v284 = vsel %vm246, %v280, 0.0
        %v285 = vsel %vm246, %v281, 0.0
        %v286 = vadd.f32 %v284, %v285
        %v287 = vsel %vm246, %v282, 0.0
        %v288 = vadd.f32 %v286, %v287
        %v289 = vsel %vm246, %v283, 0.0
        %v290 = vadd.f32 %v288, %v289
        %v291 = vsub.f32 %v275, %v290
        %v292 = vsel %vm244, %v291, 0.0
        %v293 = vsel %vm244, 1, 0
        %v294 = vcvt.s32.f32 %v293
        %v295 = vld [vmem:[#allocation2] sm:$0x3]
        %v296 = vadd.f32 %v295, %v292
        %297 = vst [vmem:[#allocation2] sm:$0x3] %v296
        %v298 = vld [vmem:[#allocation3] sm:$0x3]
        %v299 = vadd.f32 %v298, %v294
        %300 = vst [vmem:[#allocation3] sm:$0x3] %v299
        // Predicated region
        $region41: #{tpu_custom_call.1} parent=27 // pred_check
          %p301 = pneg %p233
        $region42: #{tpu_custom_call.1} parent=27 // pred_check_branch
          %303 = sbr.rel (%p301) target = $region44
        $region43: #{tpu_custom_call.1} parent=27 // pred_region
          %v304 = vld [vmem:[#allocation2] sm:$0x3]
          %v305 = vsel %vm246, %v304, 0.0
          %306 = vadd.xlane.f32.xlu0 %v305
          %v307 = vpop.xlane.xlu0 %306
          %v308 = vrot.slane %v307, 4
          %v309 = vadd.f32 %v307, %v308
          %v310 = vrot.slane %v309, 2
          %v311 = vadd.f32 %v309, %v310
          %v312 = vrot.slane %v311, 1
          %v313 = vadd.f32 %v311, %v312
          %s314 = vtos %v313
          %v315 = vld [vmem:[#allocation3] sm:$0x3]
          %v316 = vsel %vm246, %v315, 0.0
          %317 = vadd.xlane.f32.xlu0 %v316
          %v318 = vpop.xlane.xlu0 %317
          %v319 = vrot.slane %v318, 4
          %v320 = vadd.f32 %v318, %v319
          %v321 = vrot.slane %v320, 2
          %v322 = vadd.f32 %v320, %v321
          %v323 = vrot.slane %v322, 1
          %v324 = vadd.f32 %v322, %v323
          %s325 = vtos %v324
          %v326 = vlaneseq
          %v327 = vand.u32 %v326, 127
          %vm328 = vcmp.eq.s32.totalorder %v327, 0
          %v329 = vstv %s314
          %v330 = vstv %s325
          %v331 = vsel %vm328, %v329, %v330
          %vm332 = vcmask 8192
          %333 = vst.msk [vmem:[%s230] sm:$0x1] %vm332, %v331
        $region44: #{tpu_custom_call.1} parent=27 // pred_fallthru
          _
        %s334 = sand.u32 %s111, 1
        %s335 = scalar_lea.sflag [#allocation6], %s334
        %s336 = sand.u32 %s111, 1
        %s337 = scalar_lea.vmem [#allocation9], %s336
        // Predicated region
        $region45: #{tpu_custom_call.1} parent=27 // pred_check
          %p338 = pneg %p121
        $region46: #{tpu_custom_call.1} parent=27 // pred_check_branch
          %340 = sbr.rel (%p338) target = $region48
        $region47: #{tpu_custom_call.1} parent=27 // pred_region
          %s342 = ssub.s32 16, 16
          %343 = vsyncadd %s335, %s342
          %s344 = sadd.s32 %s28, %s27
          %s345 = smul.addr %s344, 16
          %s346 = scalar_lea.hbm %s2, %s345
          %s348 = sshll.u32 %s337, 4
          %s349 = int_to_ptr.vmem [resolvable:$true] %s348
          %351 = dma.vmem_to_hbm [thread:$0]  %s349, 16, %s346, %s335
        $region48: #{tpu_custom_call.1} parent=27 // pred_fallthru
          _
      $region28: #{tpu_custom_call.1} parent=5 // pred_fallthru
        _
      %p352 = scmp.le.s32.totalorder 2, %s17
      // Predicated region
      $region49: #{tpu_custom_call.1} parent=5 // pred_check
        %p353 = pneg %p352
      $region50: #{tpu_custom_call.1} parent=5 // pred_check_branch
        %355 = sbr.rel (%p353) target = $region52
      $region51: #{tpu_custom_call.1} parent=5 // pred_region
        %s356 = ssub.s32 %s17, 2
        // Predicated region
        $region53: #{tpu_custom_call.1} parent=51 // pred_check
          %p357 = pneg %p127
        $region54: #{tpu_custom_call.1} parent=51 // pred_check_branch
          %359 = sbr.rel (%p357) target = $region56
        $region55: #{tpu_custom_call.1} parent=51 // pred_region
          %s360 = sand.u32 %s112, 1
          %s361 = scalar_lea.sflag [#allocation6], %s360
          %s362 = sand.u32 %s112, 1
          %s363 = scalar_lea.vmem [#allocation9], %s362
          %364 = dma.done %s361, 16
        $region56: #{tpu_custom_call.1} parent=51 // pred_fallthru
          _
      $region52: #{tpu_custom_call.1} parent=5 // pred_fallthru
        _
    $region6: #{tpu_custom_call.1} parent=1 // loop_footer
      %s21 = sadd.s32 1, %s17
    $region7: #{tpu_custom_call.1} parent=1 // loop_footer_branch
      %16 = sbr.rel target = $region3
    $region8: #{tpu_custom_call.1} parent=1 // loop_exit
      _
    %365 = vsyncpa [#allocation5], 1
    %s366 = scalar_lea.sflag [#allocation5], 1
    %367 = vsyncpa %s366, 1
    %368 = vsyncpa [#allocation8], 1
    %s369 = scalar_lea.sflag [#allocation8], 1
    %370 = vsyncpa %s369, 1
    %371 = vsyncpa [#allocation6], 1
    %s372 = scalar_lea.sflag [#allocation6], 1
    %373 = vsyncpa %s372, 1

</llo_original>
